<compile_context>
chip_gen: v7x
topology: tpu7x:2x2x1
jax: 0.10.0
libtpu: 0.0.40
codegen_flags: <defaults>
</compile_context>

<pallas_src>
import functools

import jax
import jax.numpy as jnp
from jax.experimental import pallas as pl
from jax.experimental.pallas import tpu as pltpu

BN_EPS = 1e-5


# ----------------------------------------------------------------------------
# Kernel 1: tiled GCN node encoder
#   g_pre = (ReLU(A @ XW + b_g)) @ W_ll + b_ll            (XW = X @ W_g, host)
# plus streaming per-row-tile BatchNorm sum / centered sum-of-squares.
# ----------------------------------------------------------------------------
def _gcn_encode_kernel(adj_ref, xw_ref, w_ll_ref, bias_ref,
                       g_ref, stats_ref, acc_ref, *, tile_k):
    k = pl.program_id(1)

    @pl.when(k == 0)
    def _init():
        acc_ref[...] = jnp.zeros_like(acc_ref)

    # adj tile streams from HBM; XW (B, 32) is a constant-index block DMA'd once
    # and sliced in-kernel (no per-k re-fetch of node features).
    start = pl.multiple_of(k * tile_k, tile_k)
    xw_k = xw_ref[pl.ds(start, tile_k), :]
    acc_ref[...] += jnp.dot(adj_ref[...], xw_k,
                            preferred_element_type=jnp.float32)

    @pl.when(k == pl.num_programs(1) - 1)
    def _finalize():
        b_g = bias_ref[0:1, 0:32]
        b_ll = bias_ref[0:1, 32:64]
        h = jnp.maximum(acc_ref[...] + b_g, 0.0)                  # GCN ReLU
        g = jnp.dot(h.astype(jnp.bfloat16), w_ll_ref[...],
                    preferred_element_type=jnp.float32) + b_ll    # gat_ll
        g_ref[...] = g.astype(jnp.bfloat16)
        # Per-tile sum + centered sum-of-squares (f32); the Chan-style combine
        # across row tiles happens outside the grid -> numerically stable BN.
        s = jnp.sum(g, axis=0, keepdims=True)
        mu = s * (1.0 / g.shape[0])
        m2 = jnp.sum((g - mu) * (g - mu), axis=0, keepdims=True)
        stats_ref[0] = jnp.concatenate([s, m2], axis=-1)


# ----------------------------------------------------------------------------
# Kernel 2: feature encoder + BN scale/shift + ReLU + split 96->2 classifier.
# ----------------------------------------------------------------------------
def _head_kernel(feat_ref, g_ref, w_fe_ref, w_cf_ref, w_cg_ref, slab_ref,
                 out_ref):
    b_fe = slab_ref[0:1, 0:64]
    scale = slab_ref[0:1, 64:96]
    shift = slab_ref[0:1, 96:128]
    b_c = slab_ref[1:2, 0:2]

    feat_h = jnp.maximum(
        jnp.dot(feat_ref[...], w_fe_ref[...],
                preferred_element_type=jnp.float32) + b_fe, 0.0)
    g = jnp.maximum(g_ref[...].astype(jnp.float32) * scale + shift, 0.0)

    # Classifier split into (64,2)+(32,2): no bf16 concat scratch, no masked
    # sub-lane stores; two tiny N=2 dots stay in vregs.
    out_ref[...] = (
        jnp.dot(feat_h.astype(jnp.bfloat16), w_cf_ref[...],
                preferred_element_type=jnp.float32)
        + jnp.dot(g.astype(jnp.bfloat16), w_cg_ref[...],
                  preferred_element_type=jnp.float32)
        + b_c)


# ----------------------------------------------------------------------------
# Helpers
# ----------------------------------------------------------------------------
def _pick_tile(dim, target, align, min_tiles=1):
    """Largest multiple of `align` dividing `dim`, <= target, leaving at least
    `min_tiles` tiles; falls back to the full dim (always a legal block)."""
    upper = min(target, dim)
    upper -= upper % align
    for cand in range(upper, 0, -align):
        if dim % cand == 0 and dim // cand >= min_tiles:
            return cand
    return dim


def _vmem_limit_bytes(per_step_bytes):
    try:
        cap = pltpu.get_tpu_info().vmem_capacity_bytes
    except Exception:  # interpret mode / older runtimes
        cap = 64 << 20
    # 2x for BlockSpec double-buffering plus compiler-scratch headroom, clamped
    # to ~70% of this generation's physical VMEM (v7x has only 64 MiB).
    return int(min(max(2 * per_step_bytes + (4 << 20), 16 << 20), 0.7 * cap))


# ----------------------------------------------------------------------------
# Forward pass
# ----------------------------------------------------------------------------
def gcn_linc_embedder_transfer(feat, node_feat, adj_norm, params, *,
                               tile_b=512, tile_k=512, head_tile_b=2048):
    """Forward pass. Sweep tile_b/tile_k (512-1024) for very large B."""
    B, f_in = feat.shape
    assert adj_norm.shape == (B, B)

    # Tile selection: large tiles amortize per-step overhead; keep >= 2 row
    # tiles when possible so the "parallel" axis shards over v7x's two TCs.
    tile_b = _pick_tile(B, tile_b, 8, min_tiles=2 if B >= 256 else 1)
    tile_k = _pick_tile(B, tile_k, 128)
    head_tile = _pick_tile(B, head_tile_b, 8, min_tiles=2 if B >= 4096 else 1)
    n_i, n_k, n_h = B // tile_b, B // tile_k, B // head_tile

    bf = jnp.bfloat16
    adj_bf = adj_norm.astype(bf)
    feat_bf = feat.astype(bf)
    # Precompute XW = X @ W_g once (tiny), stream A @ XW in the kernel.
    xw_bf = jnp.dot(node_feat, params["w_g"]).astype(bf)            # (B, 32)
    w_ll_bf = params["w_ll"].astype(bf)
    w_fe_bf = params["w_fe"].astype(bf)
    w_cf_bf = params["w_c"][:64].astype(bf)                         # (64, 2)
    w_cg_bf = params["w_c"][64:].astype(bf)                         # (32, 2)
    bias1 = jnp.concatenate([params["b_g"], params["b_ll"]]).reshape(1, 64)

    bytes1 = (tile_b * tile_k * 2          # adj tile (bf16)
              + B * 32 * 2                 # XW, resident (bf16)
              + 32 * 32 * 2 + 64 * 4       # w_ll + bias slab
              + tile_b * 32 * 2 + 64 * 4   # g / stats out tiles
              + tile_b * 32 * 4)           # f32 accumulator

    g_pre, stats = pl.pallas_call(
        functools.partial(_gcn_encode_kernel, tile_k=tile_k),
        out_shape=(jax.ShapeDtypeStruct((B, 32), jnp.bfloat16),
                   jax.ShapeDtypeStruct((n_i, 1, 64), jnp.float32)),
        grid_spec=pltpu.PrefetchScalarGridSpec(
            num_scalar_prefetch=0,
            grid=(n_i, n_k),
            in_specs=[
                pl.BlockSpec((tile_b, tile_k), lambda i, k: (i, k)),
                pl.BlockSpec((B, 32), lambda i, k: (0, 0)),
                pl.BlockSpec((32, 32), lambda i, k: (0, 0)),
                pl.BlockSpec((1, 64), lambda i, k: (0, 0)),
            ],
            out_specs=[
                pl.BlockSpec((tile_b, 32), lambda i, k: (i, 0)),
                pl.BlockSpec((1, 1, 64), lambda i, k: (i, 0, 0)),
            ],
            scratch_shapes=[pltpu.VMEM((tile_b, 32), jnp.float32)],
        ),
        compiler_params=pltpu.CompilerParams(
            dimension_semantics=("parallel", "arbitrary"),
            vmem_limit_bytes=_vmem_limit_bytes(bytes1)),
    )(adj_bf, xw_bf, w_ll_bf, bias1)

    # Finalize training-mode BatchNorm1d batch statistics (biased variance)
    # via a Chan-style combine of the per-tile (sum, centered SSQ) pairs.
    sums = stats[:, 0, 0:32]                                   # (n_i, 32)
    m2s = stats[:, 0, 32:64]                                   # (n_i, 32)
    mean = jnp.sum(sums, axis=0) / B
    tile_means = sums / tile_b
    var = (jnp.sum(m2s, axis=0)
           + jnp.sum(tile_b * (tile_means - mean) ** 2, axis=0)) / B
    inv_std = jax.lax.rsqrt(var + BN_EPS)
    scale = params["gamma"] * inv_std
    shift = params["beta"] - mean * scale

    # Packed parameter slab for the head kernel: one DMA instead of four.
    slab = jnp.stack([
        jnp.concatenate([params["b_fe"], scale, shift]),       # 64+32+32 = 128
        jnp.pad(params["b_c"], (0, 126)),                      # classifier bias
    ], axis=0)                                                 # (2, 128) f32

    bytes2 = (head_tile * f_in * 2 + head_tile * 32 * 2        # feat / g tiles
              + f_in * 64 * 2 + 64 * 2 * 2 + 32 * 2 * 2        # weights
              + 2 * 128 * 4 + head_tile * 2 * 4)               # slab + out tile

    out = pl.pallas_call(
        _head_kernel,
        out_shape=jax.ShapeDtypeStruct((B, 2), jnp.float32),
        grid_spec=pltpu.PrefetchScalarGridSpec(
            num_scalar_prefetch=0,
            grid=(n_h,),
            in_specs=[
                pl.BlockSpec((head_tile, f_in), lambda i: (i, 0)),
                pl.BlockSpec((head_tile, 32), lambda i: (i, 0)),
                pl.BlockSpec((f_in, 64), lambda i: (0, 0)),
                pl.BlockSpec((64, 2), lambda i: (0, 0)),
                pl.BlockSpec((32, 2), lambda i: (0, 0)),
                pl.BlockSpec((2, 128), lambda i: (0, 0)),
            ],
            out_specs=pl.BlockSpec((head_tile, 2), lambda i: (i, 0)),
        ),
        compiler_params=pltpu.CompilerParams(
            dimension_semantics=("parallel",),
            vmem_limit_bytes=_vmem_limit_bytes(bytes2)),
    )(feat_bf, g_pre, w_fe_bf, w_cf_bf, w_cg_bf, slab)
    return out


# ----------------------------------------------------------------------------
# Parameter construction and pure-JAX reference (mirrors the kernel's mixed
# precision: bf16 MXU operands / bf16 g_pre activation, f32 accumulation).
# ----------------------------------------------------------------------------
def _xavier_uniform(key, fan_out, fan_in):
    bound = (6.0 / (fan_in + fan_out)) ** 0.5
    return jax.random.uniform(key, (fan_out, fan_in), jnp.float32, -bound, bound)


def _make_params(key, f_in, d_in):
    ks = jax.random.split(key, 8)
    # PyTorch Linear weights are [out, in]; transpose to [in, out] for x @ W.
    w_fe = _xavier_uniform(ks[0], 64, f_in).T
    b_fe = jax.random.uniform(ks[1], (64,), jnp.float32, -0.1, 0.1)
    w_g = _xavier_uniform(ks[2], 32, d_in).T
    b_g = jax.random.uniform(ks[3], (32,), jnp.float32, -0.1, 0.1)
    w_ll = _xavier_uniform(ks[4], 32, 32).T          # gat_ll uses xavier_uniform_
    b_ll = jax.random.uniform(ks[5], (32,), jnp.float32, -0.1, 0.1)
    gamma = jnp.ones((32,), jnp.float32)             # BatchNorm1d affine init
    beta = jnp.zeros((32,), jnp.float32)
    w_c = _xavier_uniform(ks[6], 2, 96).T            # (96, 2)
    b_c = jax.random.uniform(ks[7], (2,), jnp.float32, -0.1, 0.1)
    return dict(w_fe=w_fe, b_fe=b_fe, w_g=w_g, b_g=b_g, w_ll=w_ll, b_ll=b_ll,
                gamma=gamma, beta=beta, w_c=w_c, b_c=b_c)


def _reference(feat, x, adj, p):
    bf, f32 = jnp.bfloat16, jnp.float32
    xw = jnp.dot(x, p["w_g"]).astype(bf)                       # X @ W_g precompute
    agg = jnp.dot(adj.astype(bf), xw, preferred_element_type=f32)
    h = jnp.maximum(agg + p["b_g"], 0.0)
    g = jnp.dot(h.astype(bf), p["w_ll"].astype(bf),
                preferred_element_type=f32) + p["b_ll"]
    mean = jnp.mean(g, axis=0)
    var = jnp.mean((g - mean) ** 2, axis=0)
    scale = p["gamma"] * jax.lax.rsqrt(var + BN_EPS)
    shift = p["beta"] - mean * scale
    g_bn = jnp.maximum(g.astype(bf).astype(f32) * scale + shift, 0.0)
    fh = jnp.maximum(jnp.dot(feat.astype(bf), p["w_fe"].astype(bf),
                             preferred_element_type=f32) + p["b_fe"], 0.0)
    return (jnp.dot(fh.astype(bf), p["w_c"][:64].astype(bf),
                    preferred_element_type=f32)
            + jnp.dot(g_bn.astype(bf), p["w_c"][64:].astype(bf),
                      preferred_element_type=f32)
            + p["b_c"])


if __name__ == "__main__":
    B, F_IN, D_IN = 256, 128, 32      # 256 nodes -> (2, 1) row/K grid
    key = jax.random.PRNGKey(0)
    k_feat, k_x, k_adj, k_par = jax.random.split(key, 4)

    feat = jax.random.normal(k_feat, (B, F_IN), jnp.float32)
    node_feat = jax.random.normal(k_x, (B, D_IN), jnp.float32)

    # Synthetic graph over B nodes: random adjacency + self-loops, row-normalized.
    adj = (jax.random.uniform(k_adj, (B, B)) > 0.9).astype(jnp.float32)
    adj = jnp.maximum(adj, adj.T) + jnp.eye(B, dtype=jnp.float32)
    adj_norm = adj / jnp.sum(adj, axis=1, keepdims=True)

    params = _make_params(k_par, F_IN, D_IN)

    out = gcn_linc_embedder_transfer(feat, node_feat, adj_norm, params)
    out = jax.block_until_ready(out)

    ref = _reference(feat, node_feat, adj_norm, params)
    assert out.shape == (B, 2)
    assert jnp.allclose(out, ref, atol=5e-3, rtol=5e-3), "mismatch vs JAX reference"
    print("KERNEL_OK")
</pallas_src>

<mosaic_0001>
module attributes {stable_mosaic.version = 11 : i64} {
  func.func @_gcn_encode_kernel(%arg0: i32, %arg1: i32, %arg2: memref<128x256xbf16, #tpu.memory_space<vmem>>, %arg3: memref<256x32xbf16, #tpu.memory_space<vmem>>, %arg4: memref<32x32xbf16, #tpu.memory_space<vmem>>, %arg5: memref<1x64xf32, #tpu.memory_space<vmem>>, %arg6: memref<128x32xbf16, #tpu.memory_space<vmem>>, %arg7: memref<1x1x64xf32, #tpu.memory_space<vmem>>, %arg8: memref<128x32xf32, #tpu.memory_space<vmem>>) attributes {dimension_semantics = [#tpu.dimension_semantics<parallel>, #tpu.dimension_semantics<arbitrary>], iteration_bounds = array<i64: 2, 1>, scalar_prefetch = 0 : i64, scratch_operands = 1 : i64, tpu.core_type = #tpu.core_type<tc>, window_params = [{transform_indices = @transform_0, window_bounds = array<i64: 128, 256>}, {pipeline_mode = #tpu.pipeline_mode<synchronous>, transform_indices = @transform_1, window_bounds = array<i64: 256, 32>}, {pipeline_mode = #tpu.pipeline_mode<synchronous>, transform_indices = @transform_2, window_bounds = array<i64: 32, 32>}, {pipeline_mode = #tpu.pipeline_mode<synchronous>, transform_indices = @transform_3, window_bounds = array<i64: 1, 64>}, {transform_indices = @transform_4, window_bounds = array<i64: 128, 32>}, {transform_indices = @transform_5, window_bounds = array<i64: 1, 1, 64>}]} {
    %c0_i32 = arith.constant 0 : i32
    %0 = arith.cmpi eq, %arg1, %c0_i32 : i32
    %1 = arith.extui %0 : i1 to i32
    %c0_i32_0 = arith.constant 0 : i32
    %2 = arith.cmpi ne, %1, %c0_i32_0 : i32
    scf.if %2 {
      %cst_9 = arith.constant 0.000000e+00 : f32
      %15 = vector.broadcast %cst_9 : f32 to vector<128x32xf32>
      %c0_10 = arith.constant 0 : index
      %c0_11 = arith.constant 0 : index
      %16 = vector.load %arg8[%c0_10, %c0_11] : memref<128x32xf32, #tpu.memory_space<vmem>>, vector<128x32xf32>
      tpu.vector_store %arg8[%c0_10, %c0_11], %15 {strides = array<i32>} : memref<128x32xf32, #tpu.memory_space<vmem>>, vector<128x32xf32>,
    } else {
    }
    %c256_i32 = arith.constant 256 : i32
    %3 = arith.muli %arg1, %c256_i32 : i32
    %4 = tpu.assume_multiple %3, 256 : i32
    %5 = arith.index_cast %4 : i32 to index
    %c0 = arith.constant 0 : index
    %6 = vector.load %arg3[%5, %c0] : memref<256x32xbf16, #tpu.memory_space<vmem>>, vector<256x32xbf16>
    %c0_1 = arith.constant 0 : index
    %c0_2 = arith.constant 0 : index
    %7 = vector.load %arg8[%c0_1, %c0_2] : memref<128x32xf32, #tpu.memory_space<vmem>>, vector<128x32xf32>
    %c0_3 = arith.constant 0 : index
    %c0_4 = arith.constant 0 : index
    %8 = vector.load %arg2[%c0_3, %c0_4] : memref<128x256xbf16, #tpu.memory_space<vmem>>, vector<128x256xbf16>
    %cst = arith.constant dense<0.000000e+00> : vector<128x32xf32>
    %9 = tpu.matmul %8, %6, %cst {dimension_numbers = #tpu.dot_dimension_numbers<[1], [0], [0], [1], [0, 0, 1, 1], [], []>} : vector<128x256xbf16>, vector<256x32xbf16>, vector<128x32xf32> -> vector<128x32xf32>
    %10 = arith.addf %7, %9 : vector<128x32xf32>
    %c0_5 = arith.constant 0 : index
    %c0_6 = arith.constant 0 : index
    %11 = vector.load %arg8[%c0_5, %c0_6] : memref<128x32xf32, #tpu.memory_space<vmem>>, vector<128x32xf32>
    tpu.vector_store %arg8[%c0_5, %c0_6], %10 {strides = array<i32>} : memref<128x32xf32, #tpu.memory_space<vmem>>, vector<128x32xf32>,
    %c0_i32_7 = arith.constant 0 : i32
    %12 = arith.cmpi eq, %arg1, %c0_i32_7 : i32
    %13 = arith.extui %12 : i1 to i32
    %c0_i32_8 = arith.constant 0 : i32
    %14 = arith.cmpi ne, %13, %c0_i32_8 : i32
    scf.if %14 {
      %c0_9 = arith.constant 0 : index
      %c0_10 = arith.constant 0 : index
      %15 = vector.load %arg5[%c0_9, %c0_10] : memref<1x64xf32, #tpu.memory_space<vmem>>, vector<1x32xf32>
      %c0_11 = arith.constant 0 : index
      %c32 = arith.constant 32 : index
      %16 = vector.load %arg5[%c0_11, %c32] : memref<1x64xf32, #tpu.memory_space<vmem>>, vector<1x32xf32>
      %c0_12 = arith.constant 0 : index
      %c0_13 = arith.constant 0 : index
      %17 = vector.load %arg8[%c0_12, %c0_13] : memref<128x32xf32, #tpu.memory_space<vmem>>, vector<128x32xf32>
      %18 = vector.broadcast %15 : vector<1x32xf32> to vector<128x32xf32>
      %19 = arith.addf %17, %18 : vector<128x32xf32>
      %cst_14 = arith.constant 0.000000e+00 : f32
      %20 = vector.broadcast %cst_14 : f32 to vector<128x32xf32>
      %21 = arith.maximumf %19, %20 : vector<128x32xf32>
      %22 = arith.truncf %21 : vector<128x32xf32> to vector<128x32xbf16>
      %c0_15 = arith.constant 0 : index
      %c0_16 = arith.constant 0 : index
      %23 = vector.load %arg4[%c0_15, %c0_16] : memref<32x32xbf16, #tpu.memory_space<vmem>>, vector<32x32xbf16>
      %cst_17 = arith.constant dense<0.000000e+00> : vector<128x32xf32>
      %24 = tpu.matmul %22, %23, %cst_17 {dimension_numbers = #tpu.dot_dimension_numbers<[1], [0], [0], [1], [0, 0, 1, 1], [], []>} : vector<128x32xbf16>, vector<32x32xbf16>, vector<128x32xf32> -> vector<128x32xf32>
      %25 = vector.broadcast %16 : vector<1x32xf32> to vector<128x32xf32>
      %26 = arith.addf %24, %25 : vector<128x32xf32>
      %27 = arith.truncf %26 : vector<128x32xf32> to vector<128x32xbf16>
      %c0_18 = arith.constant 0 : index
      %c0_19 = arith.constant 0 : index
      %28 = vector.load %arg6[%c0_18, %c0_19] : memref<128x32xbf16, #tpu.memory_space<vmem>>, vector<128x32xbf16>
      tpu.vector_store %arg6[%c0_18, %c0_19], %27 {strides = array<i32>} : memref<128x32xbf16, #tpu.memory_space<vmem>>, vector<128x32xbf16>,
      %cst_20 = arith.constant dense<0.000000e+00> : vector<32xf32>
      %29 = vector.multi_reduction <add>, %26, %cst_20 [0] : vector<128x32xf32> to vector<32xf32>
      %30 = vector.shape_cast %29 : vector<32xf32> to vector<1x32xf32>
      %cst_21 = arith.constant 7.812500e-03 : f32
      %31 = vector.broadcast %cst_21 : f32 to vector<1x32xf32>
      %32 = arith.mulf %30, %31 : vector<1x32xf32>
      %33 = vector.broadcast %32 : vector<1x32xf32> to vector<128x32xf32>
      %34 = arith.subf %26, %33 : vector<128x32xf32>
      %35 = vector.broadcast %32 : vector<1x32xf32> to vector<128x32xf32>
      %36 = arith.subf %26, %35 : vector<128x32xf32>
      %37 = arith.mulf %34, %36 : vector<128x32xf32>
      %cst_22 = arith.constant dense<0.000000e+00> : vector<32xf32>
      %38 = vector.multi_reduction <add>, %37, %cst_22 [0] : vector<128x32xf32> to vector<32xf32>
      %39 = vector.shape_cast %38 : vector<32xf32> to vector<1x32xf32>
      %40 = tpu.concatenate %30, %39 in 1 : vector<1x32xf32>, vector<1x32xf32> -> vector<1x64xf32>
      %c0_23 = arith.constant 0 : index
      %c0_24 = arith.constant 0 : index
      %c0_25 = arith.constant 0 : index
      %41 = vector.load %arg7[%c0_23, %c0_24, %c0_25] : memref<1x1x64xf32, #tpu.memory_space<vmem>>, vector<1x1x64xf32>
      %42 = vector.shape_cast %41 : vector<1x1x64xf32> to vector<1x64xf32>
      %43 = vector.shape_cast %40 : vector<1x64xf32> to vector<1x1x64xf32>
      tpu.vector_store %arg7[%c0_23, %c0_24, %c0_25], %43 {strides = array<i32>} : memref<1x1x64xf32, #tpu.memory_space<vmem>>, vector<1x1x64xf32>,
    } else {
    }
    return
  }
  func.func @transform_0(%arg0: i32, %arg1: i32) -> (i32, i32) {
    %c0_i32 = arith.constant 0 : i32
    return %arg0, %arg1 : i32, i32
  }
  func.func @transform_1(%arg0: i32, %arg1: i32) -> (i32, i32) {
    %c0_i32 = arith.constant 0 : i32
    %c0_i32_0 = arith.constant 0 : i32
    %c0_i32_1 = arith.constant 0 : i32
    return %c0_i32, %c0_i32_0 : i32, i32
  }
  func.func @transform_2(%arg0: i32, %arg1: i32) -> (i32, i32) {
    %c0_i32 = arith.constant 0 : i32
    %c0_i32_0 = arith.constant 0 : i32
    %c0_i32_1 = arith.constant 0 : i32
    return %c0_i32, %c0_i32_0 : i32, i32
  }
  func.func @transform_3(%arg0: i32, %arg1: i32) -> (i32, i32) {
    %c0_i32 = arith.constant 0 : i32
    %c0_i32_0 = arith.constant 0 : i32
    %c0_i32_1 = arith.constant 0 : i32
    return %c0_i32, %c0_i32_0 : i32, i32
  }
  func.func @transform_4(%arg0: i32, %arg1: i32) -> (i32, i32) {
    %c0_i32 = arith.constant 0 : i32
    %c0_i32_0 = arith.constant 0 : i32
    return %arg0, %c0_i32 : i32, i32
  }
  func.func @transform_5(%arg0: i32, %arg1: i32) -> (i32, i32, i32) {
    %c0_i32 = arith.constant 0 : i32
    %c0_i32_0 = arith.constant 0 : i32
    %c0_i32_1 = arith.constant 0 : i32
    return %arg0, %c0_i32, %c0_i32_0 : i32, i32, i32
  }
}

</mosaic_0001>

<llo_original>
// kernel: tpu_custom_call.1
$region0: #{tpu_custom_call.1}
  #allocation0 [shape = 'u32[]', space=smem, size = 0x4, offset = 0x4, fixed_abs, tag = 'smem constant byte address 0x4 - core index']
  #allocation1 [shape = 'u32[144,128]{1,0:T(1,128)}', space=vmem, size = 0x12000, scoped, tag = 'internal scratch']
  #allocation2 [shape = 'f32[128,32]{1,0:T(8,128)}', space=vmem, size = 0x10000, scoped, tag = 'scratch operand']
  %s0 = inlined_call_operand.hbm [shape: bf16[256,256], index: 0, kind: input, shape index: {}]
  %s1 = inlined_call_operand.vmem [shape: bf16[256,32], index: 1, kind: input, shape index: {}]
  %s2 = inlined_call_operand.vmem [shape: bf16[32,32], index: 2, kind: input, shape index: {}]
  %s3 = inlined_call_operand.vmem [shape: f32[1,64], index: 3, kind: input, shape index: {}]
  %s4 = inlined_call_operand.vmem [shape: bf16[256,32], index: 4, kind: output, shape index: {0}]
  %s5 = inlined_call_operand.hbm [shape: f32[2,1,64], index: 5, kind: output, shape index: {1}]
  %6 = xla_tuple %s4, %s5
  %s7 = sld [smem:[#allocation0]]
  $region69: #{tpu_custom_call.1} parent=0
    _
  %s9 = ssub.s32 1, %s7
  %s10 = scalar_select 0, %s9, %s7
  $region1: #{tpu_custom_call.1} parent=0
    #allocation3 [shape = 'u8[131072]{0}', space=vmem, size = 0x20000, scoped, tag = 'input window, operand 0']
    #allocation4 [shape = 's32[2]{0}', space=sflag, size = 0x8, scoped, tag = 'scoped memory for tpu_custom_call.1']
    #allocation5 [shape = 's32[2]{0}', space=sflag, size = 0x8, scoped, tag = 'scoped memory for tpu_custom_call.1']
    #allocation6 [shape = 'u8[1024]{0}', space=vmem, size = 0x400, scoped, tag = 'output window, operand 1']
    %11 = vsyncpa [#allocation4], 0
    %s12 = scalar_lea.sflag [#allocation4], 1
    %13 = vsyncpa %s12, 0
    %14 = vsyncpa [#allocation5], 0
    %s15 = scalar_lea.sflag [#allocation5], 1
    %16 = vsyncpa %s15, 0
    loop: start=0, step=1, limit=4
    $region2: #{tpu_custom_call.1} parent=1 // loop_pre_header
      _
    $region3: #{tpu_custom_call.1} parent=1 // loop_header
      %s18 = sphi 0, %s22
      %p19 = scmp.ge.s32.totalorder %s18, 4
      %s25 = sphi 0, %s37
      %s26 = sphi 0, %s33
      %s27 = sphi 0, %s25
      %s28 = sphi 0, %s26
      %s29 = sphi 0, %s27
      %s30 = sphi 0, %s28
      %s42 = sphi 0, %s44
      %s45 = sphi 0, %s42
      %s46 = sphi 0, %s45
      %s62 = sphi 0, %s46
      %s66 = sphi 0, %s66
      %s68 = sphi 0, %s66
      %s69 = sphi 0, %s68
      %s83 = sphi 0, %s69
      %s87 = sphi 0, %s87
      %s89 = sphi 0, %s87
      %s90 = sphi 0, %s89
      %s104 = sphi 0, %s90
      %s108 = sphi 0, %s108
      %s110 = sphi 0, %s108
      %s111 = sphi 0, %s110
      %s125 = sphi 0, %s111
      %s131 = sphi 0, %s133
      %s134 = sphi 0, %s131
      %s135 = sphi 0, %s134
      %s151 = sphi 0, %s135
      %s157 = sphi 0, %s159
      %s160 = sphi 0, %s157
      %s161 = sphi 0, %s160
      %s177 = sphi 0, %s161
    $region4: #{tpu_custom_call.1} parent=1 // loop_header_branch
      %21 = sbr.rel (%p19) target = $region8
    $region5: #{tpu_custom_call.1} parent=1 // loop_body
      %s23 = ssub.s32 %s18, 1
      %s24 = ssub.s32 %s18, 2
      %s31 = sadd.s32 1, %s26
      %p32 = scmp.ge.s32.totalorder %s31, 1
      %s33 = scalar_select %p32, 0, %s31
      %s34 = sadd.s32 1, %s25
      %s35 = scalar_select %p32, %s34, %s25
      %p36 = scmp.ge.s32.totalorder %s35, 2
      %s37 = scalar_select %p36, 0, %s35
      %s38 = ssub.s32 %s25, %s37
      %s39 = ssub.s32 %s26, %s33
      %s40 = sor.u32 %s38, %s39
      %p41 = scmp.eq.s32.totalorder %s40, 0
      %s43 = sadd.s32 %s42, 1
      %s44 = scalar_select %p41, %s42, %s43
      %p47 = pneg %p41
      %p48 = scmp.eq.s32.totalorder %s18, 1
      %p49 = por %p47, %p48
      %p50 = scmp.ne.s32.totalorder %s42, %s45
      %p51 = scmp.eq.s32.totalorder %s18, 0
      %p52 = por %p50, %p51
      %p53 = scmp.ne.s32.totalorder %s42, %s45
      %p54 = scmp.eq.s32.totalorder %s23, 1
      %p55 = por %p53, %p54
      %p56 = scmp.ne.s32.totalorder %s45, %s46
      %p57 = scmp.eq.s32.totalorder %s23, 0
      %p58 = por %p56, %p57
      %p59 = scmp.ne.s32.totalorder %s45, %s46
      %p60 = scmp.eq.s32.totalorder %s24, 1
      %p61 = por %p59, %p60
      %p63 = scmp.ne.s32.totalorder %s46, %s62
      %p64 = scmp.eq.s32.totalorder %s24, 0
      %p65 = por %p63, %p64
      %s67 = sadd.s32 %s66, 1
      %p70 = scmp.eq.s32.totalorder %s18, 1
      %p71 = scmp.ne.s32.totalorder %s66, %s68
      %p72 = scmp.eq.s32.totalorder %s18, 0
      %p73 = por %p71, %p72
      %p74 = scmp.ne.s32.totalorder %s66, %s68
      %p75 = scmp.eq.s32.totalorder %s23, 1
      %p76 = por %p74, %p75
      %p77 = scmp.ne.s32.totalorder %s68, %s69
      %p78 = scmp.eq.s32.totalorder %s23, 0
      %p79 = por %p77, %p78
      %p80 = scmp.ne.s32.totalorder %s68, %s69
      %p81 = scmp.eq.s32.totalorder %s24, 1
      %p82 = por %p80, %p81
      %p84 = scmp.ne.s32.totalorder %s69, %s83
      %p85 = scmp.eq.s32.totalorder %s24, 0
      %p86 = por %p84, %p85
      %s88 = sadd.s32 %s87, 1
      %p91 = scmp.eq.s32.totalorder %s18, 1
      %p92 = scmp.ne.s32.totalorder %s87, %s89
      %p93 = scmp.eq.s32.totalorder %s18, 0
      %p94 = por %p92, %p93
      %p95 = scmp.ne.s32.totalorder %s87, %s89
      %p96 = scmp.eq.s32.totalorder %s23, 1
      %p97 = por %p95, %p96
      %p98 = scmp.ne.s32.totalorder %s89, %s90
      %p99 = scmp.eq.s32.totalorder %s23, 0
      %p100 = por %p98, %p99
      %p101 = scmp.ne.s32.totalorder %s89, %s90
      %p102 = scmp.eq.s32.totalorder %s24, 1
      %p103 = por %p101, %p102
      %p105 = scmp.ne.s32.totalorder %s90, %s104
      %p106 = scmp.eq.s32.totalorder %s24, 0
      %p107 = por %p105, %p106
      %s109 = sadd.s32 %s108, 1
      %p112 = scmp.eq.s32.totalorder %s18, 1
      %p113 = scmp.ne.s32.totalorder %s108, %s110
      %p114 = scmp.eq.s32.totalorder %s18, 0
      %p115 = por %p113, %p114
      %p116 = scmp.ne.s32.totalorder %s108, %s110
      %p117 = scmp.eq.s32.totalorder %s23, 1
      %p118 = por %p116, %p117
      %p119 = scmp.ne.s32.totalorder %s110, %s111
      %p120 = scmp.eq.s32.totalorder %s23, 0
      %p121 = por %p119, %p120
      %p122 = scmp.ne.s32.totalorder %s110, %s111
      %p123 = scmp.eq.s32.totalorder %s24, 1
      %p124 = por %p122, %p123
      %p126 = scmp.ne.s32.totalorder %s111, %s125
      %p127 = scmp.eq.s32.totalorder %s24, 0
      %p128 = por %p126, %p127
      %s129 = ssub.s32 %s25, %s37
      %p130 = scmp.eq.s32.totalorder %s129, 0
      %s132 = sadd.s32 %s131, 1
      %s133 = scalar_select %p130, %s131, %s132
      %p136 = pneg %p130
      %p137 = scmp.eq.s32.totalorder %s18, 1
      %p138 = por %p136, %p137
      %p139 = scmp.ne.s32.totalorder %s131, %s134
      %p140 = scmp.eq.s32.totalorder %s18, 0
      %p141 = por %p139, %p140
      %p142 = scmp.ne.s32.totalorder %s131, %s134
      %p143 = scmp.eq.s32.totalorder %s23, 1
      %p144 = por %p142, %p143
      %p145 = scmp.ne.s32.totalorder %s134, %s135
      %p146 = scmp.eq.s32.totalorder %s23, 0
      %p147 = por %p145, %p146
      %p148 = scmp.ne.s32.totalorder %s134, %s135
      %p149 = scmp.eq.s32.totalorder %s24, 1
      %p150 = por %p148, %p149
      %p152 = scmp.ne.s32.totalorder %s135, %s151
      %p153 = scmp.eq.s32.totalorder %s24, 0
      %p154 = por %p152, %p153
      %s155 = ssub.s32 %s25, %s37
      %p156 = scmp.eq.s32.totalorder %s155, 0
      %s158 = sadd.s32 %s157, 1
      %s159 = scalar_select %p156, %s157, %s158
      %p162 = pneg %p156
      %p163 = scmp.eq.s32.totalorder %s18, 1
      %p164 = por %p162, %p163
      %p165 = scmp.ne.s32.totalorder %s157, %s160
      %p166 = scmp.eq.s32.totalorder %s18, 0
      %p167 = por %p165, %p166
      %p168 = scmp.ne.s32.totalorder %s157, %s160
      %p169 = scmp.eq.s32.totalorder %s23, 1
      %p170 = por %p168, %p169
      %p171 = scmp.ne.s32.totalorder %s160, %s161
      %p172 = scmp.eq.s32.totalorder %s23, 0
      %p173 = por %p171, %p172
      %p174 = scmp.ne.s32.totalorder %s160, %s161
      %p175 = scmp.eq.s32.totalorder %s24, 1
      %p176 = por %p174, %p175
      %p178 = scmp.ne.s32.totalorder %s161, %s177
      %p179 = scmp.eq.s32.totalorder %s24, 0
      %p180 = por %p178, %p179
      %p181 = scmp.le.s32.totalorder 1, %s18
      %p182 = scmp.lt.s32.totalorder %s18, 3
      %p183 = pnand %p181, %p182
      %p184 = pneg %p183
      // Predicated region
      $region9: #{tpu_custom_call.1} parent=5 // pred_check
        _
      $region10: #{tpu_custom_call.1} parent=5 // pred_check_branch
        %186 = sbr.rel (%p183) target = $region12
      $region11: #{tpu_custom_call.1} parent=5 // pred_region
        %s187 = ssub.s32 %s18, 1
        // Predicated region
        $region13: #{tpu_custom_call.1} parent=11 // pred_check
          %p188 = pneg %p79
        $region14: #{tpu_custom_call.1} parent=11 // pred_check_branch
          %190 = sbr.rel (%p188) target = $region16
        $region15: #{tpu_custom_call.1} parent=11 // pred_region
          _
        $region16: #{tpu_custom_call.1} parent=11 // pred_fallthru
          _
        // Predicated region
        $region17: #{tpu_custom_call.1} parent=11 // pred_check
          %p191 = pneg %p100
        $region18: #{tpu_custom_call.1} parent=11 // pred_check_branch
          %193 = sbr.rel (%p191) target = $region20
        $region19: #{tpu_custom_call.1} parent=11 // pred_region
          _
        $region20: #{tpu_custom_call.1} parent=11 // pred_fallthru
          _
        // Predicated region
        $region21: #{tpu_custom_call.1} parent=11 // pred_check
          %p194 = pneg %p121
        $region22: #{tpu_custom_call.1} parent=11 // pred_check_branch
          %196 = sbr.rel (%p194) target = $region24
        $region23: #{tpu_custom_call.1} parent=11 // pred_region
          _
        $region24: #{tpu_custom_call.1} parent=11 // pred_fallthru
          _
      $region12: #{tpu_custom_call.1} parent=5 // pred_fallthru
        _
      %p197 = scmp.lt.s32.totalorder %s18, 2
      // Predicated region
      $region25: #{tpu_custom_call.1} parent=5 // pred_check
        %p198 = pneg %p197
      $region26: #{tpu_custom_call.1} parent=5 // pred_check_branch
        %200 = sbr.rel (%p198) target = $region28
      $region27: #{tpu_custom_call.1} parent=5 // pred_region
        // Predicated region
        $region29: #{tpu_custom_call.1} parent=27 // pred_check
          %p201 = pneg %p52
        $region30: #{tpu_custom_call.1} parent=27 // pred_check_branch
          %203 = sbr.rel (%p201) target = $region32
        $region31: #{tpu_custom_call.1} parent=27 // pred_region
          %s204 = sand.u32 %s42, 1
          %s205 = scalar_lea.sflag [#allocation4], %s204
          %s206 = sand.u32 %s42, 1
          %s207 = smul.addr %s206, 128
          %s208 = scalar_lea.vmem [#allocation3], %s207
          %s209 = smul.u32 16, %s25
          %s210 = smul.u32 2, %s26
          %s212 = ssub.s32 2048, 2048
          %213 = vsyncadd %s205, %s212
          %s214 = smul.addr %s209, 2
          %s215 = sadd.s32 %s210, %s214
          %s216 = smul.addr %s215, 64
          %s217 = scalar_lea.hbm %s0, %s216
          %s218 = sshll.u32 %s208, 4
          %s219 = int_to_ptr.vmem [resolvable:$true] %s218
          %224 = dma.hbm_to_vmem [thread:$0]  %s217, 2048, %s219, %s205, 128, 128, 8
        $region32: #{tpu_custom_call.1} parent=27 // pred_fallthru
          _
      $region28: #{tpu_custom_call.1} parent=5 // pred_fallthru
        _
      %p225 = scmp.le.s32.totalorder 1, %s18
      %p226 = scmp.lt.s32.totalorder %s18, 3
      %p227 = pnand %p225, %p226
      %p228 = pneg %p227
      // Predicated region
      $region33: #{tpu_custom_call.1} parent=5 // pred_check
        _
      $region34: #{tpu_custom_call.1} parent=5 // pred_check_branch
        %230 = sbr.rel (%p227) target = $region36
      $region35: #{tpu_custom_call.1} parent=5 // pred_region
        %s231 = ssub.s32 %s18, 1
        %s232 = sand.u32 %s45, 1
        %s233 = scalar_lea.sflag [#allocation4], %s232
        %s234 = sand.u32 %s45, 1
        %s235 = smul.addr %s234, 128
        %s236 = scalar_lea.vmem [#allocation3], %s235
        // Predicated region
        $region37: #{tpu_custom_call.1} parent=35 // pred_check
          %p237 = pneg %p58
        $region38: #{tpu_custom_call.1} parent=35 // pred_check_branch
          %239 = sbr.rel (%p237) target = $region40
        $region39: #{tpu_custom_call.1} parent=35 // pred_region
          %240 = dma.done %s233, 2048
        $region40: #{tpu_custom_call.1} parent=35 // pred_fallthru
          _
        %s241 = sand.u32 %s45, 1
        %s242 = scalar_lea.sflag [#allocation4], %s241
        %s243 = sand.u32 %s45, 1
        %s244 = smul.addr %s243, 128
        %s245 = scalar_lea.vmem [#allocation3], %s244
        %p246 = pneg %p58
        %p247 = pneg %p55
        %p248 = pneg %p79
        %p249 = pneg %p76
        %p250 = pneg %p100
        %p251 = pneg %p97
        %p252 = pneg %p121
        %p253 = pneg %p118
        %p254 = pneg %p147
        %p255 = pneg %p144
        %s256 = smul.u32 16, %s27
        %p257 = scmp.lt.s32.totalorder %s256, 31
        %s258 = scalar_select %p257, %s256, 31
        %s259 = smul.addr %s258, 4
        %s260 = scalar_lea.vmem %s4, %s259
        %p261 = pneg %p173
        %p262 = pneg %p170
        %s263 = sand.u32 %s160, 1
        %s264 = scalar_lea.sflag [#allocation5], %s263
        %s265 = sand.u32 %s160, 1
        %s266 = scalar_lea.vmem [#allocation6], %s265
        %s267 = smul.u32 16, %s27
        %s268 = smul.u32 2, %s28
        %s269 = smul.u32 16, %s27
        %p270 = scmp.lt.s32.totalorder %s269, 31
        %s271 = scalar_select %p270, %s269, 31
        %s272 = smul.addr %s271, 4
        %s273 = scalar_lea.vmem %s4, %s272
        %s274 = smul.u32 16, %s27
        %p276 = scmp.eq.s32.totalorder %s28, 0
        // Predicated region
        $region41: #{tpu_custom_call.1} parent=35 // pred_check
          %p277 = pneg %p276
        $region42: #{tpu_custom_call.1} parent=35 // pred_check_branch
          %279 = sbr.rel (%p277) target = $region44
        $region43: #{tpu_custom_call.1} parent=35 // pred_region
          %vm280 = vcmask 261120
          %281 = vst.msk [vmem:[#allocation2] sm:$0xff] %vm280, 0.0
          %282 = vst.msk [vmem:[#allocation2 + $0x8] sm:$0xff] %vm280, 0.0
          %283 = vst.msk [vmem:[#allocation2 + $0x10] sm:$0xff] %vm280, 0.0
          %284 = vst.msk [vmem:[#allocation2 + $0x18] sm:$0xff] %vm280, 0.0
          %285 = vst.msk [vmem:[#allocation2 + $0x20] sm:$0xff] %vm280, 0.0
          %286 = vst.msk [vmem:[#allocation2 + $0x28] sm:$0xff] %vm280, 0.0
          %287 = vst.msk [vmem:[#allocation2 + $0x30] sm:$0xff] %vm280, 0.0
          %288 = vst.msk [vmem:[#allocation2 + $0x38] sm:$0xff] %vm280, 0.0
          %289 = vst.msk [vmem:[#allocation2 + $0x40] sm:$0xff] %vm280, 0.0
          %290 = vst.msk [vmem:[#allocation2 + $0x48] sm:$0xff] %vm280, 0.0
          %291 = vst.msk [vmem:[#allocation2 + $0x50] sm:$0xff] %vm280, 0.0
          %292 = vst.msk [vmem:[#allocation2 + $0x58] sm:$0xff] %vm280, 0.0
          %293 = vst.msk [vmem:[#allocation2 + $0x60] sm:$0xff] %vm280, 0.0
          %294 = vst.msk [vmem:[#allocation2 + $0x68] sm:$0xff] %vm280, 0.0
          %295 = vst.msk [vmem:[#allocation2 + $0x70] sm:$0xff] %vm280, 0.0
          %296 = vst.msk [vmem:[#allocation2 + $0x78] sm:$0xff] %vm280, 0.0
        $region44: #{tpu_custom_call.1} parent=35 // pred_fallthru
          _
        %s297 = smul.u32 %s28, 256
        %s298 = sshra.s32 %s297, 3
        %s299 = sand.u32 %s297, 7
        %s300 = smul.addr %s298, 4
        %s301 = scalar_lea.vmem %s1, %s300
        %v302 = vld [vmem:[%s301] sm:$0xf]
        %v303 = vld [vmem:[%s301 + $0x4] sm:$0xf]
        %v304 = vld [vmem:[%s301 + $0x8] sm:$0xf]
        %v305 = vld [vmem:[%s301 + $0xc] sm:$0xf]
        %v306 = vld [vmem:[%s301 + $0x10] sm:$0xf]
        %v307 = vld [vmem:[%s301 + $0x14] sm:$0xf]
        %v308 = vld [vmem:[%s301 + $0x18] sm:$0xf]
        %v309 = vld [vmem:[%s301 + $0x1c] sm:$0xf]
        %v310 = vld [vmem:[%s301 + $0x20] sm:$0xf]
        %v311 = vld [vmem:[%s301 + $0x24] sm:$0xf]
        %v312 = vld [vmem:[%s301 + $0x28] sm:$0xf]
        %v313 = vld [vmem:[%s301 + $0x2c] sm:$0xf]
        %v314 = vld [vmem:[%s301 + $0x30] sm:$0xf]
        %v315 = vld [vmem:[%s301 + $0x34] sm:$0xf]
        %v316 = vld [vmem:[%s301 + $0x38] sm:$0xf]
        %v317 = vld [vmem:[%s301 + $0x3c] sm:$0xf]
        %v318 = vld [vmem:[%s301 + $0x40] sm:$0xf]
        %v319 = vld [vmem:[%s301 + $0x44] sm:$0xf]
        %v320 = vld [vmem:[%s301 + $0x48] sm:$0xf]
        %v321 = vld [vmem:[%s301 + $0x4c] sm:$0xf]
        %v322 = vld [vmem:[%s301 + $0x50] sm:$0xf]
        %v323 = vld [vmem:[%s301 + $0x54] sm:$0xf]
        %v324 = vld [vmem:[%s301 + $0x58] sm:$0xf]
        %v325 = vld [vmem:[%s301 + $0x5c] sm:$0xf]
        %v326 = vld [vmem:[%s301 + $0x60] sm:$0xf]
        %v327 = vld [vmem:[%s301 + $0x64] sm:$0xf]
        %v328 = vld [vmem:[%s301 + $0x68] sm:$0xf]
        %v329 = vld [vmem:[%s301 + $0x6c] sm:$0xf]
        %v330 = vld [vmem:[%s301 + $0x70] sm:$0xf]
        %v331 = vld [vmem:[%s301 + $0x74] sm:$0xf]
        %v332 = vld [vmem:[%s301 + $0x78] sm:$0xf]
        %v333 = vld [vmem:[%s301 + $0x7c] sm:$0xf]
        %v334 = vld [vmem:[#allocation2] sm:$0xff]
        %v335 = vld [vmem:[#allocation2 + $0x8] sm:$0xff]
        %v336 = vld [vmem:[#allocation2 + $0x10] sm:$0xff]
        %v337 = vld [vmem:[#allocation2 + $0x18] sm:$0xff]
        %v338 = vld [vmem:[#allocation2 + $0x20] sm:$0xff]
        %v339 = vld [vmem:[#allocation2 + $0x28] sm:$0xff]
        %v340 = vld [vmem:[#allocation2 + $0x30] sm:$0xff]
        %v341 = vld [vmem:[#allocation2 + $0x38] sm:$0xff]
        %v342 = vld [vmem:[#allocation2 + $0x40] sm:$0xff]
        %v343 = vld [vmem:[#allocation2 + $0x48] sm:$0xff]
        %v344 = vld [vmem:[#allocation2 + $0x50] sm:$0xff]
        %v345 = vld [vmem:[#allocation2 + $0x58] sm:$0xff]
        %v346 = vld [vmem:[#allocation2 + $0x60] sm:$0xff]
        %v347 = vld [vmem:[#allocation2 + $0x68] sm:$0xff]
        %v348 = vld [vmem:[#allocation2 + $0x70] sm:$0xff]
        %v349 = vld [vmem:[#allocation2 + $0x78] sm:$0xff]
        %v350 = vld [vmem:[%s236] sm:$0xff]
        %v351 = vld [vmem:[%s236 + $0x8] sm:$0xff]
        %v352 = vld [vmem:[%s236 + $0x10] sm:$0xff]
        %v353 = vld [vmem:[%s236 + $0x18] sm:$0xff]
        %v354 = vld [vmem:[%s236 + $0x20] sm:$0xff]
        %v355 = vld [vmem:[%s236 + $0x28] sm:$0xff]
        %v356 = vld [vmem:[%s236 + $0x30] sm:$0xff]
        %v357 = vld [vmem:[%s236 + $0x38] sm:$0xff]
        %v358 = vld [vmem:[%s236 + $0x40] sm:$0xff]
        %v359 = vld [vmem:[%s236 + $0x48] sm:$0xff]
        %v360 = vld [vmem:[%s236 + $0x50] sm:$0xff]
        %v361 = vld [vmem:[%s236 + $0x58] sm:$0xff]
        %v362 = vld [vmem:[%s236 + $0x60] sm:$0xff]
        %v363 = vld [vmem:[%s236 + $0x68] sm:$0xff]
        %v364 = vld [vmem:[%s236 + $0x70] sm:$0xff]
        %v365 = vld [vmem:[%s236 + $0x78] sm:$0xff]
        %v382 = vunpack.c.l.b16 %v350
        %v383 = vunpack.c.h.b16 %v350
        %v384 = vunpack.c.l.b16 %v351
        %v385 = vunpack.c.h.b16 %v351
        %v386 = vunpack.c.l.b16 %v352
        %v387 = vunpack.c.h.b16 %v352
        %v388 = vunpack.c.l.b16 %v353
        %v389 = vunpack.c.h.b16 %v353
        %v390 = vunpack.c.l.b16 %v354
        %v391 = vunpack.c.h.b16 %v354
        %v392 = vunpack.c.l.b16 %v355
        %v393 = vunpack.c.h.b16 %v355
        %v394 = vunpack.c.l.b16 %v356
        %v395 = vunpack.c.h.b16 %v356
        %v396 = vunpack.c.l.b16 %v357
        %v397 = vunpack.c.h.b16 %v357
        %v398 = vunpack.c.l.b16 %v358
        %v399 = vunpack.c.h.b16 %v358
        %v400 = vunpack.c.l.b16 %v359
        %v401 = vunpack.c.h.b16 %v359
        %v402 = vunpack.c.l.b16 %v360
        %v403 = vunpack.c.h.b16 %v360
        %v404 = vunpack.c.l.b16 %v361
        %v405 = vunpack.c.h.b16 %v361
        %v406 = vunpack.c.l.b16 %v362
        %v407 = vunpack.c.h.b16 %v362
        %v408 = vunpack.c.l.b16 %v363
        %v409 = vunpack.c.h.b16 %v363
        %v410 = vunpack.c.l.b16 %v364
        %v411 = vunpack.c.h.b16 %v364
        %v412 = vunpack.c.l.b16 %v365
        %v413 = vunpack.c.h.b16 %v365
        %v414 = vpack.c.b16 %v384, %v382
        %v415 = vpack.c.b16 %v385, %v383
        %v416 = vpack.c.b16 %v388, %v386
        %v417 = vpack.c.b16 %v389, %v387
        %v418 = vpack.c.b16 %v392, %v390
        %v419 = vpack.c.b16 %v393, %v391
        %v420 = vpack.c.b16 %v396, %v394
        %v421 = vpack.c.b16 %v397, %v395
        %v422 = vpack.c.b16 %v400, %v398
        %v423 = vpack.c.b16 %v401, %v399
        %v424 = vpack.c.b16 %v404, %v402
        %v425 = vpack.c.b16 %v405, %v403
        %v426 = vpack.c.b16 %v408, %v406
        %v427 = vpack.c.b16 %v409, %v407
        %v428 = vpack.c.b16 %v412, %v410
        %v429 = vpack.c.b16 %v413, %v411
        %v478 = vunpack.c.l.b16 %v302
        %v479 = vunpack.c.l.b16 %v303
        %v480 = vunpack.c.l.b16 %v304
        %v481 = vunpack.c.l.b16 %v305
        %v482 = vunpack.c.l.b16 %v306
        %v483 = vunpack.c.l.b16 %v307
        %v484 = vunpack.c.l.b16 %v308
        %v485 = vunpack.c.l.b16 %v309
        %v486 = vunpack.c.l.b16 %v310
        %v487 = vunpack.c.l.b16 %v311
        %v488 = vunpack.c.l.b16 %v312
        %v489 = vunpack.c.l.b16 %v313
        %v490 = vunpack.c.l.b16 %v314
        %v491 = vunpack.c.l.b16 %v315
        %v492 = vunpack.c.l.b16 %v316
        %v493 = vunpack.c.l.b16 %v317
        %v494 = vunpack.c.l.b16 %v318
        %v495 = vunpack.c.l.b16 %v319
        %v496 = vunpack.c.l.b16 %v320
        %v497 = vunpack.c.l.b16 %v321
        %v498 = vunpack.c.l.b16 %v322
        %v499 = vunpack.c.l.b16 %v323
        %v500 = vunpack.c.l.b16 %v324
        %v501 = vunpack.c.l.b16 %v325
        %v502 = vunpack.c.l.b16 %v326
        %v503 = vunpack.c.l.b16 %v327
        %v504 = vunpack.c.l.b16 %v328
        %v505 = vunpack.c.l.b16 %v329
        %v506 = vunpack.c.l.b16 %v330
        %v507 = vunpack.c.l.b16 %v331
        %v508 = vunpack.c.l.b16 %v332
        %v509 = vunpack.c.l.b16 %v333
        %v510 = vpack.c.b16 %v479, %v478
        %v511 = vpack.c.b16 %v481, %v480
        %v512 = vpack.c.b16 %v483, %v482
        %v513 = vpack.c.b16 %v485, %v484
        %v514 = vpack.c.b16 %v487, %v486
        %v515 = vpack.c.b16 %v489, %v488
        %v516 = vpack.c.b16 %v491, %v490
        %v517 = vpack.c.b16 %v493, %v492
        %v518 = vpack.c.b16 %v495, %v494
        %v519 = vpack.c.b16 %v497, %v496
        %v520 = vpack.c.b16 %v499, %v498
        %v521 = vpack.c.b16 %v501, %v500
        %v522 = vpack.c.b16 %v503, %v502
        %v523 = vpack.c.b16 %v505, %v504
        %v524 = vpack.c.b16 %v507, %v506
        %v525 = vpack.c.b16 %v509, %v508
        %542 = vmatprep.subr.bf16.mxu0 0
        %543 = vmatpush1.bf16.msra.mxu0 %v510
        %544 = vmatprep.subr.bf16.mxu0 0
        %545 = vmatpush1.bf16.msra.mxu0 %v511
        %546 = vmatprep.subr.bf16.mxu0 0
        %547 = vmatpush1.bf16.msra.mxu0 %v512
        %548 = vmatprep.subr.bf16.mxu0 0
        %549 = vmatpush1.bf16.msra.mxu0 %v513
        %550 = vmatprep.subr.bf16.mxu0 0
        %551 = vmatpush1.bf16.msra.mxu0 %v514
        %552 = vmatprep.subr.bf16.mxu0 0
        %553 = vmatpush1.bf16.msra.mxu0 %v515
        %554 = vmatprep.subr.bf16.mxu0 0
        %555 = vmatpush1.bf16.msra.mxu0 %v516
        %556 = vmatprep.subr.bf16.mxu0 0
        %557 = vmatpush1.bf16.msra.mxu0 %v517
        %558 = vmatprep.subr.bf16.mxu0 0
        %559 = vmatpush1.bf16.msra.mxu0 %v518
        %560 = vmatprep.subr.bf16.mxu0 0
        %561 = vmatpush1.bf16.msra.mxu0 %v519
        %562 = vmatprep.subr.bf16.mxu0 0
        %563 = vmatpush1.bf16.msra.mxu0 %v520
        %564 = vmatprep.subr.bf16.mxu0 0
        %565 = vmatpush1.bf16.msra.mxu0 %v521
        %566 = vmatprep.subr.bf16.mxu0 0
        %567 = vmatpush1.bf16.msra.mxu0 %v522
        %568 = vmatprep.subr.bf16.mxu0 0
        %569 = vmatpush1.bf16.msra.mxu0 %v523
        %570 = vmatprep.subr.bf16.mxu0 0
        %571 = vmatpush1.bf16.msra.mxu0 %v524
        %572 = vmatprep.subr.bf16.mxu0 0
        %573 = vmatpush1.bf16.msra.mxu0 %v525
        %574 = vmatprep.mubr.bf16.mxu0 %v415
        %575 = vmatmul.mubr.bf16.gmra.mrb[0].mxu0 %v414
        %v576 = vpop.f32.mrb[0].mxu0
        %v577 = vadd.f32 0.0, %v576
        %v578 = vpop.f32.mrb[0].mxu0
        %v579 = vpop.f32.mrb[0].mxu0
        %v580 = vadd.f32 0.0, %v579
        %v581 = vpop.f32.mrb[0].mxu0
        %582 = vmatprep.mubr.bf16.mxu0 %v417
        %583 = vmatmul.mubr.bf16.gmra.mrb[0].mxu0 %v416
        %v584 = vpop.f32.mrb[0].mxu0
        %v585 = vadd.f32 0.0, %v584
        %v586 = vpop.f32.mrb[0].mxu0
        %v587 = vpop.f32.mrb[0].mxu0
        %v588 = vadd.f32 0.0, %v587
        %v589 = vpop.f32.mrb[0].mxu0
        %590 = vmatprep.mubr.bf16.mxu0 %v419
        %591 = vmatmul.mubr.bf16.gmra.mrb[0].mxu0 %v418
        %v592 = vpop.f32.mrb[0].mxu0
        %v593 = vadd.f32 0.0, %v592
        %v594 = vpop.f32.mrb[0].mxu0
        %v595 = vpop.f32.mrb[0].mxu0
        %v596 = vadd.f32 0.0, %v595
        %v597 = vpop.f32.mrb[0].mxu0
        %598 = vmatprep.mubr.bf16.mxu0 %v421
        %599 = vmatmul.mubr.bf16.gmra.mrb[0].mxu0 %v420
        %v600 = vpop.f32.mrb[0].mxu0
        %v601 = vadd.f32 0.0, %v600
        %v602 = vpop.f32.mrb[0].mxu0
        %v603 = vpop.f32.mrb[0].mxu0
        %v604 = vadd.f32 0.0, %v603
        %v605 = vpop.f32.mrb[0].mxu0
        %606 = vmatprep.mubr.bf16.mxu0 %v423
        %607 = vmatmul.mubr.bf16.gmra.mrb[0].mxu0 %v422
        %v608 = vpop.f32.mrb[0].mxu0
        %v609 = vadd.f32 0.0, %v608
        %v610 = vpop.f32.mrb[0].mxu0
        %v611 = vpop.f32.mrb[0].mxu0
        %v612 = vadd.f32 0.0, %v611
        %v613 = vpop.f32.mrb[0].mxu0
        %614 = vmatprep.mubr.bf16.mxu0 %v425
        %615 = vmatmul.mubr.bf16.gmra.mrb[0].mxu0 %v424
        %v616 = vpop.f32.mrb[0].mxu0
        %v617 = vadd.f32 0.0, %v616
        %v618 = vpop.f32.mrb[0].mxu0
        %v619 = vpop.f32.mrb[0].mxu0
        %v620 = vadd.f32 0.0, %v619
        %v621 = vpop.f32.mrb[0].mxu0
        %622 = vmatprep.mubr.bf16.mxu0 %v427
        %623 = vmatmul.mubr.bf16.gmra.mrb[0].mxu0 %v426
        %v624 = vpop.f32.mrb[0].mxu0
        %v625 = vadd.f32 0.0, %v624
        %v626 = vpop.f32.mrb[0].mxu0
        %v627 = vpop.f32.mrb[0].mxu0
        %v628 = vadd.f32 0.0, %v627
        %v629 = vpop.f32.mrb[0].mxu0
        %630 = vmatprep.mubr.bf16.mxu0 %v429
        %631 = vmatmul.mubr.bf16.gmra.mrb[0].mxu0 %v428
        %v632 = vpop.f32.mrb[0].mxu0
        %v633 = vadd.f32 0.0, %v632
        %v634 = vpop.f32.mrb[0].mxu0
        %v635 = vpop.f32.mrb[0].mxu0
        %v636 = vadd.f32 0.0, %v635
        %v637 = vpop.f32.mrb[0].mxu0
        %638 = vdwg.mxu0
        %v639 = vadd.f32 %v334, %v577
        %v640 = vadd.f32 %v335, %v580
        %v641 = vadd.f32 %v336, %v585
        %v642 = vadd.f32 %v337, %v588
        %v643 = vadd.f32 %v338, %v593
        %v644 = vadd.f32 %v339, %v596
        %v645 = vadd.f32 %v340, %v601
        %v646 = vadd.f32 %v341, %v604
        %v647 = vadd.f32 %v342, %v609
        %v648 = vadd.f32 %v343, %v612
        %v649 = vadd.f32 %v344, %v617
        %v650 = vadd.f32 %v345, %v620
        %v651 = vadd.f32 %v346, %v625
        %v652 = vadd.f32 %v347, %v628
        %v653 = vadd.f32 %v348, %v633
        %v654 = vadd.f32 %v349, %v636
        %vm655 = vcmask 261120
        %656 = vst.msk [vmem:[#allocation2] sm:$0xff] %vm655, %v639
        %657 = vst.msk [vmem:[#allocation2 + $0x8] sm:$0xff] %vm655, %v640
        %658 = vst.msk [vmem:[#allocation2 + $0x10] sm:$0xff] %vm655, %v641
        %659 = vst.msk [vmem:[#allocation2 + $0x18] sm:$0xff] %vm655, %v642
        %660 = vst.msk [vmem:[#allocation2 + $0x20] sm:$0xff] %vm655, %v643
        %661 = vst.msk [vmem:[#allocation2 + $0x28] sm:$0xff] %vm655, %v644
        %662 = vst.msk [vmem:[#allocation2 + $0x30] sm:$0xff] %vm655, %v645
        %663 = vst.msk [vmem:[#allocation2 + $0x38] sm:$0xff] %vm655, %v646
        %664 = vst.msk [vmem:[#allocation2 + $0x40] sm:$0xff] %vm655, %v647
        %665 = vst.msk [vmem:[#allocation2 + $0x48] sm:$0xff] %vm655, %v648
        %666 = vst.msk [vmem:[#allocation2 + $0x50] sm:$0xff] %vm655, %v649
        %667 = vst.msk [vmem:[#allocation2 + $0x58] sm:$0xff] %vm655, %v650
        %668 = vst.msk [vmem:[#allocation2 + $0x60] sm:$0xff] %vm655, %v651
        %669 = vst.msk [vmem:[#allocation2 + $0x68] sm:$0xff] %vm655, %v652
        %670 = vst.msk [vmem:[#allocation2 + $0x70] sm:$0xff] %vm655, %v653
        %671 = vst.msk [vmem:[#allocation2 + $0x78] sm:$0xff] %vm655, %v654
        // Predicated region
        $region45: #{tpu_custom_call.1} parent=35 // pred_check
          %p672 = pneg %p276
        $region46: #{tpu_custom_call.1} parent=35 // pred_check_branch
          %674 = sbr.rel (%p672) target = $region48
        $region47: #{tpu_custom_call.1} parent=35 // pred_region
          %v675 = vld [vmem:[%s3] sm:$0x1]
          %v676 = vld [vmem:[#allocation2] sm:$0xff]
          %v677 = vld [vmem:[#allocation2 + $0x8] sm:$0xff]
          %v678 = vld [vmem:[#allocation2 + $0x10] sm:$0xff]
          %v679 = vld [vmem:[#allocation2 + $0x18] sm:$0xff]
          %v680 = vld [vmem:[#allocation2 + $0x20] sm:$0xff]
          %v681 = vld [vmem:[#allocation2 + $0x28] sm:$0xff]
          %v682 = vld [vmem:[#allocation2 + $0x30] sm:$0xff]
          %v683 = vld [vmem:[#allocation2 + $0x38] sm:$0xff]
          %v684 = vld [vmem:[#allocation2 + $0x40] sm:$0xff]
          %v685 = vld [vmem:[#allocation2 + $0x48] sm:$0xff]
          %v686 = vld [vmem:[#allocation2 + $0x50] sm:$0xff]
          %v687 = vld [vmem:[#allocation2 + $0x58] sm:$0xff]
          %v688 = vld [vmem:[#allocation2 + $0x60] sm:$0xff]
          %v689 = vld [vmem:[#allocation2 + $0x68] sm:$0xff]
          %v690 = vld [vmem:[#allocation2 + $0x70] sm:$0xff]
          %v691 = vld [vmem:[#allocation2 + $0x78] sm:$0xff]
          %v693 = vlaneseq
          %v694 = vshrl.u32 %v693, 7
          %v695 = vsub.s32 0, %v694
          %v696 = vrot.slane %v675, %v695
          %v698 = vadd.f32 %v676, %v696
          %v699 = vadd.f32 %v677, %v696
          %v700 = vadd.f32 %v678, %v696
          %v701 = vadd.f32 %v679, %v696
          %v702 = vadd.f32 %v680, %v696
          %v703 = vadd.f32 %v681, %v696
          %v704 = vadd.f32 %v682, %v696
          %v705 = vadd.f32 %v683, %v696
          %v706 = vadd.f32 %v684, %v696
          %v707 = vadd.f32 %v685, %v696
          %v708 = vadd.f32 %v686, %v696
          %v709 = vadd.f32 %v687, %v696
          %v710 = vadd.f32 %v688, %v696
          %v711 = vadd.f32 %v689, %v696
          %v712 = vadd.f32 %v690, %v696
          %v713 = vadd.f32 %v691, %v696
          %v714 = vmax.f32 %v698, 0.0
          %v715 = vmax.f32 %v699, 0.0
          %v716 = vmax.f32 %v700, 0.0
          %v717 = vmax.f32 %v701, 0.0
          %v718 = vmax.f32 %v702, 0.0
          %v719 = vmax.f32 %v703, 0.0
          %v720 = vmax.f32 %v704, 0.0
          %v721 = vmax.f32 %v705, 0.0
          %v722 = vmax.f32 %v706, 0.0
          %v723 = vmax.f32 %v707, 0.0
          %v724 = vmax.f32 %v708, 0.0
          %v725 = vmax.f32 %v709, 0.0
          %v726 = vmax.f32 %v710, 0.0
          %v727 = vmax.f32 %v711, 0.0
          %v728 = vmax.f32 %v712, 0.0
          %v729 = vmax.f32 %v713, 0.0
          %v730 = vpack.c.bf16 %v715, %v714
          %v731 = vpack.c.bf16 %v717, %v716
          %v732 = vpack.c.bf16 %v719, %v718
          %v733 = vpack.c.bf16 %v721, %v720
          %v734 = vpack.c.bf16 %v723, %v722
          %v735 = vpack.c.bf16 %v725, %v724
          %v736 = vpack.c.bf16 %v727, %v726
          %v737 = vpack.c.bf16 %v729, %v728
          %v738 = vld [vmem:[%s2] sm:$0xf]
          %v739 = vld [vmem:[%s2 + $0x4] sm:$0xf]
          %v740 = vld [vmem:[%s2 + $0x8] sm:$0xf]
          %v741 = vld [vmem:[%s2 + $0xc] sm:$0xf]
          %v746 = vunpack.c.l.b16 %v738
          %v747 = vunpack.c.l.b16 %v739
          %v748 = vunpack.c.l.b16 %v740
          %v749 = vunpack.c.l.b16 %v741
          %v750 = vpack.c.b16 %v747, %v746
          %v751 = vpack.c.b16 %v749, %v748
          %754 = vrot.lane.b32.xlu0 %v696, 96
          %v755 = vpop.permute.xlu0 %754
          %v758 = vsel %vm655, %v730, 0
          %v761 = vsel %vm655, %v731, 0
          %v764 = vsel %vm655, %v732, 0
          %v767 = vsel %vm655, %v733, 0
          %v770 = vsel %vm655, %v734, 0
          %v773 = vsel %vm655, %v735, 0
          %v776 = vsel %vm655, %v736, 0
          %v779 = vsel %vm655, %v737, 0
          %781 = vmatprep.subr.bf16.mxu0 0
          %782 = vmatpush1.bf16.msra.mxu0 %v750
          %783 = vmatprep.subr.bf16.mxu0 0
          %784 = vmatpush1.bf16.msra.mxu0 %v751
          %785 = vmatprep.subr.bf16.mxu0 0
          %786 = vmatpush1.bf16.msra.mxu0 0
          %787 = vmatprep.subr.bf16.mxu0 0
          %788 = vmatpush1.bf16.msra.mxu0 0
          %789 = vmatprep.subr.bf16.mxu0 0
          %790 = vmatpush1.bf16.msra.mxu0 0
          %791 = vmatprep.subr.bf16.mxu0 0
          %792 = vmatpush1.bf16.msra.mxu0 0
          %793 = vmatprep.subr.bf16.mxu0 0
          %794 = vmatpush1.bf16.msra.mxu0 0
          %795 = vmatprep.subr.bf16.mxu0 0
          %796 = vmatpush1.bf16.msra.mxu0 0
          %797 = vmatprep.subr.bf16.mxu0 0
          %798 = vmatpush1.bf16.msra.mxu0 0
          %799 = vmatprep.subr.bf16.mxu0 0
          %800 = vmatpush1.bf16.msra.mxu0 0
          %801 = vmatprep.subr.bf16.mxu0 0
          %802 = vmatpush1.bf16.msra.mxu0 0
          %803 = vmatprep.subr.bf16.mxu0 0
          %804 = vmatpush1.bf16.msra.mxu0 0
          %805 = vmatprep.subr.bf16.mxu0 0
          %806 = vmatpush1.bf16.msra.mxu0 0
          %807 = vmatprep.subr.bf16.mxu0 0
          %808 = vmatpush1.bf16.msra.mxu0 0
          %809 = vmatprep.subr.bf16.mxu0 0
          %810 = vmatpush1.bf16.msra.mxu0 0
          %811 = vmatprep.subr.bf16.mxu0 0
          %812 = vmatpush1.bf16.msra.mxu0 0
          %813 = vmatprep.mubr.bf16.mxu0 0
          %814 = vmatmul.mubr.bf16.gmra.mrb[0].mxu0 %v758
          %v815 = vpop.f32.mrb[0].mxu0
          %v816 = vadd.f32 %v755, %v815
          %v817 = vpop.f32.mrb[0].mxu0
          %v818 = vpop.f32.mrb[0].mxu0
          %v819 = vadd.f32 %v755, %v818
          %v820 = vpop.f32.mrb[0].mxu0
          %821 = vmatprep.mubr.bf16.mxu0 0
          %822 = vmatmul.mubr.bf16.gmra.mrb[0].mxu0 %v761
          %v823 = vpop.f32.mrb[0].mxu0
          %v824 = vadd.f32 %v755, %v823
          %v825 = vpop.f32.mrb[0].mxu0
          %v826 = vpop.f32.mrb[0].mxu0
          %v827 = vadd.f32 %v755, %v826
          %v828 = vpop.f32.mrb[0].mxu0
          %829 = vmatprep.mubr.bf16.mxu0 0
          %830 = vmatmul.mubr.bf16.gmra.mrb[0].mxu0 %v764
          %v831 = vpop.f32.mrb[0].mxu0
          %v832 = vadd.f32 %v755, %v831
          %v833 = vpop.f32.mrb[0].mxu0
          %v834 = vpop.f32.mrb[0].mxu0
          %v835 = vadd.f32 %v755, %v834
          %v836 = vpop.f32.mrb[0].mxu0
          %837 = vmatprep.mubr.bf16.mxu0 0
          %838 = vmatmul.mubr.bf16.gmra.mrb[0].mxu0 %v767
          %v839 = vpop.f32.mrb[0].mxu0
          %v840 = vadd.f32 %v755, %v839
          %v841 = vpop.f32.mrb[0].mxu0
          %v842 = vpop.f32.mrb[0].mxu0
          %v843 = vadd.f32 %v755, %v842
          %v844 = vpop.f32.mrb[0].mxu0
          %845 = vmatprep.mubr.bf16.mxu0 0
          %846 = vmatmul.mubr.bf16.gmra.mrb[0].mxu0 %v770
          %v847 = vpop.f32.mrb[0].mxu0
          %v848 = vadd.f32 %v755, %v847
          %v849 = vpop.f32.mrb[0].mxu0
          %v850 = vpop.f32.mrb[0].mxu0
          %v851 = vadd.f32 %v755, %v850
          %v852 = vpop.f32.mrb[0].mxu0
          %853 = vmatprep.mubr.bf16.mxu0 0
          %854 = vmatmul.mubr.bf16.gmra.mrb[0].mxu0 %v773
          %v855 = vpop.f32.mrb[0].mxu0
          %v856 = vadd.f32 %v755, %v855
          %v857 = vpop.f32.mrb[0].mxu0
          %v858 = vpop.f32.mrb[0].mxu0
          %v859 = vadd.f32 %v755, %v858
          %v860 = vpop.f32.mrb[0].mxu0
          %861 = vmatprep.mubr.bf16.mxu0 0
          %862 = vmatmul.mubr.bf16.gmra.mrb[0].mxu0 %v776
          %v863 = vpop.f32.mrb[0].mxu0
          %v864 = vadd.f32 %v755, %v863
          %v865 = vpop.f32.mrb[0].mxu0
          %v866 = vpop.f32.mrb[0].mxu0
          %v867 = vadd.f32 %v755, %v866
          %v868 = vpop.f32.mrb[0].mxu0
          %869 = vmatprep.mubr.bf16.mxu0 0
          %870 = vmatmul.mubr.bf16.gmra.mrb[0].mxu0 %v779
          %v871 = vpop.f32.mrb[0].mxu0
          %v872 = vadd.f32 %v755, %v871
          %v873 = vpop.f32.mrb[0].mxu0
          %v874 = vpop.f32.mrb[0].mxu0
          %v875 = vadd.f32 %v755, %v874
          %v876 = vpop.f32.mrb[0].mxu0
          %877 = vdwg.mxu0
          %v878 = vpack.c.bf16 %v819, %v816
          %v879 = vpack.c.bf16 %v827, %v824
          %v880 = vpack.c.bf16 %v835, %v832
          %v881 = vpack.c.bf16 %v843, %v840
          %v882 = vpack.c.bf16 %v851, %v848
          %v883 = vpack.c.bf16 %v859, %v856
          %v884 = vpack.c.bf16 %v867, %v864
          %v885 = vpack.c.bf16 %v875, %v872
          %v894 = vunpack.c.l.b16 %v878
          %v895 = vunpack.c.h.b16 %v878
          %v896 = vunpack.c.l.b16 %v879
          %v897 = vunpack.c.h.b16 %v879
          %v898 = vunpack.c.l.b16 %v880
          %v899 = vunpack.c.h.b16 %v880
          %v900 = vunpack.c.l.b16 %v881
          %v901 = vunpack.c.h.b16 %v881
          %v902 = vunpack.c.l.b16 %v882
          %v903 = vunpack.c.h.b16 %v882
          %v904 = vunpack.c.l.b16 %v883
          %v905 = vunpack.c.h.b16 %v883
          %v906 = vunpack.c.l.b16 %v884
          %v907 = vunpack.c.h.b16 %v884
          %v908 = vunpack.c.l.b16 %v885
          %v909 = vunpack.c.h.b16 %v885
          %v910 = vpack.c.b16 %v894, %v894
          %v911 = vpack.c.b16 %v895, %v895
          %v912 = vpack.c.b16 %v896, %v896
          %v913 = vpack.c.b16 %v897, %v897
          %v914 = vpack.c.b16 %v898, %v898
          %v915 = vpack.c.b16 %v899, %v899
          %v916 = vpack.c.b16 %v900, %v900
          %v917 = vpack.c.b16 %v901, %v901
          %v918 = vpack.c.b16 %v902, %v902
          %v919 = vpack.c.b16 %v903, %v903
          %v920 = vpack.c.b16 %v904, %v904
          %v921 = vpack.c.b16 %v905, %v905
          %v922 = vpack.c.b16 %v906, %v906
          %v923 = vpack.c.b16 %v907, %v907
          %v924 = vpack.c.b16 %v908, %v908
          %v925 = vpack.c.b16 %v909, %v909
          %vm942 = vcmask 257024
          %943 = vst.msk [vmem:[%s273] sm:$0xf] %vm942, %v910
          %944 = vst.msk [vmem:[%s273 + $0x4] sm:$0xf] %vm942, %v911
          %945 = vst.msk [vmem:[%s273 + $0x8] sm:$0xf] %vm942, %v912
          %946 = vst.msk [vmem:[%s273 + $0xc] sm:$0xf] %vm942, %v913
          %947 = vst.msk [vmem:[%s273 + $0x10] sm:$0xf] %vm942, %v914
          %948 = vst.msk [vmem:[%s273 + $0x14] sm:$0xf] %vm942, %v915
          %949 = vst.msk [vmem:[%s273 + $0x18] sm:$0xf] %vm942, %v916
          %950 = vst.msk [vmem:[%s273 + $0x1c] sm:$0xf] %vm942, %v917
          %951 = vst.msk [vmem:[%s273 + $0x20] sm:$0xf] %vm942, %v918
          %952 = vst.msk [vmem:[%s273 + $0x24] sm:$0xf] %vm942, %v919
          %953 = vst.msk [vmem:[%s273 + $0x28] sm:$0xf] %vm942, %v920
          %954 = vst.msk [vmem:[%s273 + $0x2c] sm:$0xf] %vm942, %v921
          %955 = vst.msk [vmem:[%s273 + $0x30] sm:$0xf] %vm942, %v922
          %956 = vst.msk [vmem:[%s273 + $0x34] sm:$0xf] %vm942, %v923
          %957 = vst.msk [vmem:[%s273 + $0x38] sm:$0xf] %vm942, %v924
          %958 = vst.msk [vmem:[%s273 + $0x3c] sm:$0xf] %vm942, %v925
          %v959 = vsel %vm655, %v816, 0.0
          %v960 = vsel %vm655, %v819, 0.0
          %v961 = vadd.f32 %v959, %v960
          %v962 = vsel %vm655, %v824, 0.0
          %v963 = vadd.f32 %v961, %v962
          %v964 = vsel %vm655, %v827, 0.0
          %v965 = vadd.f32 %v963, %v964
          %v966 = vsel %vm655, %v832, 0.0
          %v967 = vadd.f32 %v965, %v966
          %v968 = vsel %vm655, %v835, 0.0
          %v969 = vadd.f32 %v967, %v968
          %v970 = vsel %vm655, %v840, 0.0
          %v971 = vadd.f32 %v969, %v970
          %v972 = vsel %vm655, %v843, 0.0
          %v973 = vadd.f32 %v971, %v972
          %v974 = vsel %vm655, %v848, 0.0
          %v975 = vadd.f32 %v973, %v974
          %v976 = vsel %vm655, %v851, 0.0
          %v977 = vadd.f32 %v975, %v976
          %v978 = vsel %vm655, %v856, 0.0
          %v979 = vadd.f32 %v977, %v978
          %v980 = vsel %vm655, %v859, 0.0
          %v981 = vadd.f32 %v979, %v980
          %v982 = vsel %vm655, %v864, 0.0
          %v983 = vadd.f32 %v981, %v982
          %v984 = vsel %vm655, %v867, 0.0
          %v985 = vadd.f32 %v983, %v984
          %v986 = vsel %vm655, %v872, 0.0
          %v987 = vadd.f32 %v985, %v986
          %v988 = vsel %vm655, %v875, 0.0
          %v989 = vadd.f32 %v987, %v988
          %v990 = vrot.slane %v989, 4
          %v991 = vadd.f32 %v989, %v990
          %v992 = vrot.slane %v991, 2
          %v993 = vadd.f32 %v991, %v992
          %v994 = vrot.slane %v993, 1
          %v995 = vadd.f32 %v993, %v994
          %v996 = vmul.f32 %v995, 0.0078125
          %v997 = vsub.f32 %v816, %v996
          %v998 = vsub.f32 %v819, %v996
          %v999 = vsub.f32 %v824, %v996
          %v1000 = vsub.f32 %v827, %v996
          %v1001 = vsub.f32 %v832, %v996
          %v1002 = vsub.f32 %v835, %v996
          %v1003 = vsub.f32 %v840, %v996
          %v1004 = vsub.f32 %v843, %v996
          %v1005 = vsub.f32 %v848, %v996
          %v1006 = vsub.f32 %v851, %v996
          %v1007 = vsub.f32 %v856, %v996
          %v1008 = vsub.f32 %v859, %v996
          %v1009 = vsub.f32 %v864, %v996
          %v1010 = vsub.f32 %v867, %v996
          %v1011 = vsub.f32 %v872, %v996
          %v1012 = vsub.f32 %v875, %v996
          %v1013 = vmul.f32 %v997, %v997
          %v1014 = vmul.f32 %v998, %v998
          %v1015 = vmul.f32 %v999, %v999
          %v1016 = vmul.f32 %v1000, %v1000
          %v1017 = vmul.f32 %v1001, %v1001
          %v1018 = vmul.f32 %v1002, %v1002
          %v1019 = vmul.f32 %v1003, %v1003
          %v1020 = vmul.f32 %v1004, %v1004
          %v1021 = vmul.f32 %v1005, %v1005
          %v1022 = vmul.f32 %v1006, %v1006
          %v1023 = vmul.f32 %v1007, %v1007
          %v1024 = vmul.f32 %v1008, %v1008
          %v1025 = vmul.f32 %v1009, %v1009
          %v1026 = vmul.f32 %v1010, %v1010
          %v1027 = vmul.f32 %v1011, %v1011
          %v1028 = vmul.f32 %v1012, %v1012
          %v1029 = vsel %vm655, %v1013, 0.0
          %v1030 = vsel %vm655, %v1014, 0.0
          %v1031 = vadd.f32 %v1029, %v1030
          %v1032 = vsel %vm655, %v1015, 0.0
          %v1033 = vadd.f32 %v1031, %v1032
          %v1034 = vsel %vm655, %v1016, 0.0
          %v1035 = vadd.f32 %v1033, %v1034
          %v1036 = vsel %vm655, %v1017, 0.0
          %v1037 = vadd.f32 %v1035, %v1036
          %v1038 = vsel %vm655, %v1018, 0.0
          %v1039 = vadd.f32 %v1037, %v1038
          %v1040 = vsel %vm655, %v1019, 0.0
          %v1041 = vadd.f32 %v1039, %v1040
          %v1042 = vsel %vm655, %v1020, 0.0
          %v1043 = vadd.f32 %v1041, %v1042
          %v1044 = vsel %vm655, %v1021, 0.0
          %v1045 = vadd.f32 %v1043, %v1044
          %v1046 = vsel %vm655, %v1022, 0.0
          %v1047 = vadd.f32 %v1045, %v1046
          %v1048 = vsel %vm655, %v1023, 0.0
          %v1049 = vadd.f32 %v1047, %v1048
          %v1050 = vsel %vm655, %v1024, 0.0
          %v1051 = vadd.f32 %v1049, %v1050
          %v1052 = vsel %vm655, %v1025, 0.0
          %v1053 = vadd.f32 %v1051, %v1052
          %v1054 = vsel %vm655, %v1026, 0.0
          %v1055 = vadd.f32 %v1053, %v1054
          %v1056 = vsel %vm655, %v1027, 0.0
          %v1057 = vadd.f32 %v1055, %v1056
          %v1058 = vsel %vm655, %v1028, 0.0
          %v1059 = vadd.f32 %v1057, %v1058
          %v1060 = vrot.slane %v1059, 4
          %v1061 = vadd.f32 %v1059, %v1060
          %v1062 = vrot.slane %v1061, 2
          %v1063 = vadd.f32 %v1061, %v1062
          %v1064 = vrot.slane %v1063, 1
          %v1065 = vadd.f32 %v1063, %v1064
          %1067 = vrot.lane.b32.xlu0 %v1065, 32
          %v1068 = vpop.permute.xlu0 %1067
          %v1070 = vsel %vm655, %v995, %v1068
          %vm1071 = vcmask 516096
          %1072 = vst.msk [vmem:[%s266] sm:$0x1] %vm1071, %v1070
        $region48: #{tpu_custom_call.1} parent=35 // pred_fallthru
          _
        %s1073 = smul.u32 16, %s27
        %p1074 = scmp.lt.s32.totalorder %s1073, 31
        %s1075 = scalar_select %p1074, %s1073, 31
        %s1076 = smul.addr %s1075, 4
        %s1077 = scalar_lea.vmem %s4, %s1076
        %s1078 = sand.u32 %s160, 1
        %s1079 = scalar_lea.sflag [#allocation5], %s1078
        %s1080 = sand.u32 %s160, 1
        %s1081 = scalar_lea.vmem [#allocation6], %s1080
        // Predicated region
        $region49: #{tpu_custom_call.1} parent=35 // pred_check
          %p1082 = pneg %p144
        $region50: #{tpu_custom_call.1} parent=35 // pred_check_branch
          %1084 = sbr.rel (%p1082) target = $region52
        $region51: #{tpu_custom_call.1} parent=35 // pred_region
          %s1085 = smul.u32 16, %s27
        $region52: #{tpu_custom_call.1} parent=35 // pred_fallthru
          _
        // Predicated region
        $region53: #{tpu_custom_call.1} parent=35 // pred_check
          %p1086 = pneg %p170
        $region54: #{tpu_custom_call.1} parent=35 // pred_check_branch
          %1088 = sbr.rel (%p1086) target = $region56
        $region55: #{tpu_custom_call.1} parent=35 // pred_region
          %s1090 = ssub.s32 16, 16
          %1091 = vsyncadd %s1079, %s1090
          %s1092 = smul.addr %s27, 16
          %s1093 = scalar_lea.hbm %s5, %s1092
          %s1095 = sshll.u32 %s1081, 4
          %s1096 = int_to_ptr.vmem [resolvable:$true] %s1095
          %1098 = dma.vmem_to_hbm [thread:$0]  %s1096, 16, %s1093, %s1079
        $region56: #{tpu_custom_call.1} parent=35 // pred_fallthru
          _
      $region36: #{tpu_custom_call.1} parent=5 // pred_fallthru
        _
      %p1099 = scmp.le.s32.totalorder 2, %s18
      // Predicated region
      $region57: #{tpu_custom_call.1} parent=5 // pred_check
        %p1100 = pneg %p1099
      $region58: #{tpu_custom_call.1} parent=5 // pred_check_branch
        %1102 = sbr.rel (%p1100) target = $region60
      $region59: #{tpu_custom_call.1} parent=5 // pred_region
        %s1103 = ssub.s32 %s18, 2
        // Predicated region
        $region61: #{tpu_custom_call.1} parent=59 // pred_check
          %p1104 = pneg %p150
        $region62: #{tpu_custom_call.1} parent=59 // pred_check_branch
          %1106 = sbr.rel (%p1104) target = $region64
        $region63: #{tpu_custom_call.1} parent=59 // pred_region
          %s1107 = smul.u32 16, %s29
          %p1108 = scmp.lt.s32.totalorder %s1107, 31
          %s1109 = scalar_select %p1108, %s1107, 31
          %s1110 = smul.addr %s1109, 4
          %s1111 = scalar_lea.vmem %s4, %s1110
        $region64: #{tpu_custom_call.1} parent=59 // pred_fallthru
          _
        // Predicated region
        $region65: #{tpu_custom_call.1} parent=59 // pred_check
          %p1112 = pneg %p176
        $region66: #{tpu_custom_call.1} parent=59 // pred_check_branch
          %1114 = sbr.rel (%p1112) target = $region68
        $region67: #{tpu_custom_call.1} parent=59 // pred_region
          %s1115 = sand.u32 %s161, 1
          %s1116 = scalar_lea.sflag [#allocation5], %s1115
          %s1117 = sand.u32 %s161, 1
          %s1118 = scalar_lea.vmem [#allocation6], %s1117
          %1119 = dma.done %s1116, 16
        $region68: #{tpu_custom_call.1} parent=59 // pred_fallthru
          _
      $region60: #{tpu_custom_call.1} parent=5 // pred_fallthru
        _
    $region6: #{tpu_custom_call.1} parent=1 // loop_footer
      %s22 = sadd.s32 1, %s18
    $region7: #{tpu_custom_call.1} parent=1 // loop_footer_branch
      %17 = sbr.rel target = $region3
    $region8: #{tpu_custom_call.1} parent=1 // loop_exit
      _
    %1120 = vsyncpa [#allocation4], 1
    %s1121 = scalar_lea.sflag [#allocation4], 1
    %1122 = vsyncpa %s1121, 1
    %1123 = vsyncpa [#allocation5], 1
    %s1124 = scalar_lea.sflag [#allocation5], 1
    %1125 = vsyncpa %s1124, 1

</llo_original>
